<compile_context>
chip_gen: v7x
topology: tpu7x:2x2x1
jax: 0.10.0
libtpu: 0.0.40
codegen_flags: <defaults>
</compile_context>

<pallas_src>
import functools

import jax
import jax.numpy as jnp
from jax.experimental import pallas as pl
from jax.experimental.pallas import tpu as pltpu

BN_EPS = 1e-5


def _vmem_capacity_bytes():
    """Per-core VMEM capacity; conservative fallback if the query is missing."""
    try:
        return int(pltpu.get_tpu_info().vmem_capacity_bytes)
    except Exception:
        return 64 << 20  # v7x per-TC size: safe lower bound for all targets


def _num_tensorcores():
    """TensorCores reachable through a 'parallel' grid axis on one device."""
    try:
        kind = jax.devices()[0].device_kind.lower()
    except Exception:
        return 1
    for tag in ("v4", "v5p", "v7", "7x"):
        if tag in kind:
            return 2
    return 1


def _bn_relu_per_view(h, b_true, b_pad, gamma, beta, *, mask_pad_rows):
    """Training-mode BatchNorm1d (+ReLU) applied independently to each view.

    h: (2*b_pad, C) f32.  Rows [0, b_pad) are view 1, rows [b_pad, 2*b_pad)
    are view 2; rows >= b_true inside each view are zero padding.  Statistics
    use the true batch size b_true: padded rows contribute exactly 0 to the
    sums, and the variance gets a closed-form correction for them.
    """
    two_bp, c = h.shape
    n_pad = b_pad - b_true
    h3 = h.reshape(2, b_pad, c)                        # sublane-aligned retile
    mean = jnp.sum(h3, axis=1, keepdims=True) / b_true
    d = h3 - mean
    ssq = jnp.sum(d * d, axis=1, keepdims=True)
    var = (ssq - n_pad * mean * mean) / b_true         # biased var, true rows
    out = d * jax.lax.rsqrt(var + BN_EPS) * gamma + beta
    out = jnp.maximum(out, 0.0)
    if mask_pad_rows and n_pad:
        row = jax.lax.broadcasted_iota(jnp.int32, h3.shape, 1)
        out = jnp.where(row < b_true, out, 0.0)        # keep pad rows exactly 0
    return out.reshape(two_bp, c)


def _layer1_kernel(v1_ref, v2_ref, w1_ref, g1_ref, b1_ref, h1_ref, *,
                   b_true, b_pad):
    """K-tiled layer 1 + per-view BN1 + ReLU.  Grid = (c_block, k)."""
    k = pl.program_id(1)

    @pl.when(k == 0)
    def _zero():
        h1_ref[...] = jnp.zeros_like(h1_ref)

    # bf16 MXU matmuls (cast in-kernel), f32 accumulation directly into the
    # resident output block: view 1 -> top half, view 2 -> bottom half.
    w = w1_ref[...]
    h1_ref[0:b_pad, :] += jnp.dot(v1_ref[...].astype(w.dtype), w,
                                  preferred_element_type=jnp.float32)
    h1_ref[b_pad:2 * b_pad, :] += jnp.dot(v2_ref[...].astype(w.dtype), w,
                                          preferred_element_type=jnp.float32)

    @pl.when(k == pl.num_programs(1) - 1)
    def _epilogue():
        h1_ref[...] = _bn_relu_per_view(h1_ref[...], b_true, b_pad,
                                        g1_ref[...], b1_ref[...],
                                        mask_pad_rows=True)


def _head_kernel(h1_ref, w2_ref, g2_ref, b2_ref, w3_ref, o_ref, *,
                 b_true, b_pad):
    """Layers 2/3 with BN2+ReLU — tiny, single VMEM block, no grid."""
    h = jnp.dot(h1_ref[...].astype(w2_ref.dtype), w2_ref[...],
                preferred_element_type=jnp.float32)
    h = _bn_relu_per_view(h, b_true, b_pad, g2_ref[...], b2_ref[...],
                          mask_pad_rows=False)
    o_ref[...] = jnp.dot(h.astype(w3_ref.dtype), w3_ref[...],
                         preferred_element_type=jnp.float32).astype(o_ref.dtype)


def _choose_tk(in_features, bytes_per_row, budget_bytes, max_tk):
    """Largest multiple of 128 dividing in_features whose double-buffered
    stream footprint (bytes_per_row per K row) stays under budget_bytes."""
    if in_features % 128 != 0:
        return in_features
    tk_cap = max(128, (budget_bytes // bytes_per_row) // 128 * 128)
    tk = min(tk_cap, max_tk, in_features)
    tk = max(128, (tk // 128) * 128)
    while in_features % tk != 0:
        tk -= 128
    return tk


@functools.partial(jax.jit, static_argnames=("max_tk",))
def projector_fused(view1_flat, view2_flat, w1, g1, b1, w2, g2, b2, w3, *,
                    max_tk=65536):
    """view1_flat/view2_flat: (B, F) float inputs.
    Returns (2*B_pad, C) f32: rows [0, B) are the view-1 projections and rows
    [B_pad, B_pad+B) are the view-2 projections."""
    b, f = view1_flat.shape
    c = w1.shape[1]

    # Pad batch to the sublane (8) so the per-view BN reshape is layout-pure.
    # BN stats are corrected for the zero rows inside the kernel, so results
    # match the unpadded module exactly.
    b_pad = pl.cdiv(b, 8) * 8
    if b_pad != b:
        pad = ((0, b_pad - b), (0, 0))
        view1_flat = jnp.pad(view1_flat, pad)
        view2_flat = jnp.pad(view2_flat, pad)

    # Split output channels across TensorCores when there are two and the
    # halves stay lane-aligned (BN1 is per-channel, so the split is exact).
    nc = 2 if (_num_tensorcores() == 2 and c % 256 == 0) else 1
    cb = c // nc

    # Per-generation VMEM budget for the double-buffered (x1, x2, w1) streams.
    capacity = _vmem_capacity_bytes()
    x_bytes = jnp.dtype(view1_flat.dtype).itemsize
    w_bytes = jnp.dtype(w1.dtype).itemsize
    n_buf = 2
    bytes_per_row = n_buf * (2 * b_pad * x_bytes + cb * w_bytes)
    budget = int(capacity * 0.6)
    tk = _choose_tk(f, bytes_per_row, budget, max_tk)
    n_k = f // tk
    stream_bytes = bytes_per_row * tk
    vmem_limit = int(min(capacity - (4 << 20), stream_bytes + (24 << 20)))

    # NOTE: at module scale 2*B stays small; if 2*B ever grows past a few
    # hundred rows, add an M (row) "parallel" grid axis and keep K innermost.
    grid_spec = pltpu.PrefetchScalarGridSpec(
        num_scalar_prefetch=0,
        grid=(nc, n_k),
        in_specs=[
            pl.BlockSpec((b_pad, tk), lambda ci, k: (0, k)),   # view 1 (stream)
            pl.BlockSpec((b_pad, tk), lambda ci, k: (0, k)),   # view 2 (stream)
            pl.BlockSpec((tk, cb), lambda ci, k: (k, ci)),     # w1      (stream)
            pl.BlockSpec((1, cb), lambda ci, k: (0, ci)),      # gamma1
            pl.BlockSpec((1, cb), lambda ci, k: (0, ci)),      # beta1
        ],
        out_specs=pl.BlockSpec((2 * b_pad, cb), lambda ci, k: (0, ci)),
    )

    flops = 2 * (2 * b_pad) * f * c
    bytes_accessed = (f * c * w_bytes                 # w1 stream (read once)
                      + nc * 2 * b_pad * f * x_bytes  # x streams (per c block)
                      + 2 * b_pad * c * 4 + 8 * c)    # output + gammas/betas

    h1 = pl.pallas_call(
        functools.partial(_layer1_kernel, b_true=b, b_pad=b_pad),
        out_shape=jax.ShapeDtypeStruct((2 * b_pad, c), jnp.float32),
        grid_spec=grid_spec,
        compiler_params=pltpu.CompilerParams(
            dimension_semantics=("parallel", "arbitrary"),
            vmem_limit_bytes=vmem_limit),
        cost_estimate=pl.CostEstimate(flops=flops, transcendentals=0,
                                      bytes_accessed=bytes_accessed),
    )(view1_flat, view2_flat, w1, g1, b1)

    # Layers 2/3 (+BN2+ReLU): <1% of the bytes/FLOPs -> one tiny VMEM block.
    out = pl.pallas_call(
        functools.partial(_head_kernel, b_true=b, b_pad=b_pad),
        out_shape=jax.ShapeDtypeStruct((2 * b_pad, c), jnp.float32),
    )(h1, w2, g2, b2, w3)
    return out


def barlow_twins_forward(view1, view2, params, *, max_tk=65536):
    """view1/view2: (B, C, D, H, W) NCDHW, like the PyTorch module."""
    b = view1.shape[0]
    f = params["w1"].shape[0]
    # Flattening is metadata-only; the views are passed separately so there is
    # no wrapper-side concat/cast HBM round trip before the kernel.
    out = projector_fused(view1.reshape(b, f), view2.reshape(b, f),
                          params["w1"], params["g1"], params["b1"],
                          params["w2"], params["g2"], params["b2"],
                          params["w3"], max_tk=max_tk)
    b_pad = out.shape[0] // 2
    return out[:b], out[b_pad:b_pad + b]


def init_params(key, in_features, proj_channels):
    # PyTorch Linear stores weight as (out, in); we store the transposed
    # (in, out) layout used directly by the kernel, in bf16 (MXU-native,
    # halves HBM bytes of the dominant w1 stream).
    k1, k2, k3 = jax.random.split(key, 3)
    s1 = 1.0 / jnp.sqrt(in_features)
    s2 = 1.0 / jnp.sqrt(proj_channels)
    return {
        "w1": jax.random.uniform(k1, (in_features, proj_channels), jnp.float32,
                                 -s1, s1).astype(jnp.bfloat16),
        "w2": jax.random.uniform(k2, (proj_channels, proj_channels), jnp.float32,
                                 -s2, s2).astype(jnp.bfloat16),
        "w3": jax.random.uniform(k3, (proj_channels, proj_channels), jnp.float32,
                                 -s2, s2).astype(jnp.bfloat16),
        # BatchNorm1d default init: weight=1, bias=0 (kept in f32).
        "g1": jnp.ones((1, proj_channels), jnp.float32),
        "b1": jnp.zeros((1, proj_channels), jnp.float32),
        "g2": jnp.ones((1, proj_channels), jnp.float32),
        "b2": jnp.zeros((1, proj_channels), jnp.float32),
    }


def reference_forward(view1, view2, params):
    """Pure-JAX reference mirroring the kernel's mixed precision exactly."""
    def proj(x):
        h = jnp.dot(x.astype(jnp.bfloat16), params["w1"],
                    preferred_element_type=jnp.float32)
        m = h.mean(0, keepdims=True)
        v = ((h - m) ** 2).mean(0, keepdims=True)
        h = (h - m) * jax.lax.rsqrt(v + BN_EPS) * params["g1"] + params["b1"]
        h = jnp.maximum(h, 0.0)
        h = jnp.dot(h.astype(jnp.bfloat16), params["w2"],
                    preferred_element_type=jnp.float32)
        m = h.mean(0, keepdims=True)
        v = ((h - m) ** 2).mean(0, keepdims=True)
        h = (h - m) * jax.lax.rsqrt(v + BN_EPS) * params["g2"] + params["b2"]
        h = jnp.maximum(h, 0.0)
        return jnp.dot(h.astype(jnp.bfloat16), params["w3"],
                       preferred_element_type=jnp.float32)
    b = view1.shape[0]
    f = params["w1"].shape[0]
    return proj(view1.reshape(b, f)), proj(view2.reshape(b, f))


if __name__ == "__main__":
    # Small shapes consistent with the module's forward:
    # original is (B, 256, 16, 16, 16) -> 256*16^3 features, proj_channels=512.
    # Here: (B, 4, 8, 8, 8) -> 4*8^3 = 2048 features; C = 128.
    chans, spatial = 4, 8
    in_features = chans * spatial * spatial * spatial    # 2048
    proj_channels = 128

    key = jax.random.PRNGKey(0)
    kp, kv1, kv2, kv3, kv4 = jax.random.split(key, 5)
    params = init_params(kp, in_features, proj_channels)

    # max_tk=512 -> several pipelined K steps at this toy size (exercises the
    # accumulate + epilogue path); at module scale the VMEM budget in
    # _choose_tk picks multi-ten-thousand-row w1 tiles automatically.

    # Case 1: sublane-aligned batch (no padding path).
    batch = 8
    view1 = jax.random.normal(kv1, (batch, chans, spatial, spatial, spatial),
                              jnp.float32)
    view2 = jax.random.normal(kv2, (batch, chans, spatial, spatial, spatial),
                              jnp.float32)
    p1, p2 = barlow_twins_forward(view1, view2, params, max_tk=512)
    jax.block_until_ready((p1, p2))
    r1, r2 = reference_forward(view1, view2, params)
    assert p1.shape == (batch, proj_channels)
    assert p2.shape == (batch, proj_channels)
    assert jnp.allclose(p1, r1, atol=2e-3, rtol=2e-3), \
        float(jnp.max(jnp.abs(p1 - r1)))
    assert jnp.allclose(p2, r2, atol=2e-3, rtol=2e-3), \
        float(jnp.max(jnp.abs(p2 - r2)))

    # Case 2: batch not a multiple of 8 (exercises the zero-padded BN path).
    batch = 6
    view1 = jax.random.normal(kv3, (batch, chans, spatial, spatial, spatial),
                              jnp.float32)
    view2 = jax.random.normal(kv4, (batch, chans, spatial, spatial, spatial),
                              jnp.float32)
    p1, p2 = barlow_twins_forward(view1, view2, params, max_tk=512)
    jax.block_until_ready((p1, p2))
    r1, r2 = reference_forward(view1, view2, params)
    assert p1.shape == (batch, proj_channels)
    assert p2.shape == (batch, proj_channels)
    assert jnp.allclose(p1, r1, atol=2e-3, rtol=2e-3), \
        float(jnp.max(jnp.abs(p1 - r1)))
    assert jnp.allclose(p2, r2, atol=2e-3, rtol=2e-3), \
        float(jnp.max(jnp.abs(p2 - r2)))

    print("KERNEL_OK")
</pallas_src>

<mosaic_0001>
module attributes {stable_mosaic.version = 11 : i64} {
  func.func @_layer1_kernel(%arg0: i32, %arg1: i32, %arg2: memref<8x512xf32, #tpu.memory_space<vmem>>, %arg3: memref<8x512xf32, #tpu.memory_space<vmem>>, %arg4: memref<512x128xbf16, #tpu.memory_space<vmem>>, %arg5: memref<1x128xf32, #tpu.memory_space<vmem>>, %arg6: memref<1x128xf32, #tpu.memory_space<vmem>>, %arg7: memref<16x128xf32, #tpu.memory_space<vmem>>) attributes {dimension_semantics = [#tpu.dimension_semantics<parallel>, #tpu.dimension_semantics<arbitrary>], iteration_bounds = array<i64: 1, 4>, scalar_prefetch = 0 : i64, scratch_operands = 0 : i64, tpu.core_type = #tpu.core_type<tc>, window_params = [{transform_indices = @transform_0, window_bounds = array<i64: 8, 512>}, {transform_indices = @transform_1, window_bounds = array<i64: 8, 512>}, {transform_indices = @transform_2, window_bounds = array<i64: 512, 128>}, {transform_indices = @transform_3, window_bounds = array<i64: 1, 128>}, {transform_indices = @transform_4, window_bounds = array<i64: 1, 128>}, {transform_indices = @transform_5, window_bounds = array<i64: 16, 128>}]} {
    %c0_i32 = arith.constant 0 : i32
    %0 = arith.cmpi eq, %arg1, %c0_i32 : i32
    %1 = arith.extui %0 : i1 to i32
    %c0_i32_0 = arith.constant 0 : i32
    %2 = arith.cmpi ne, %1, %c0_i32_0 : i32
    scf.if %2 {
      %cst_15 = arith.constant 0.000000e+00 : f32
      %19 = vector.broadcast %cst_15 : f32 to vector<16x128xf32>
      %c0_16 = arith.constant 0 : index
      %c0_17 = arith.constant 0 : index
      %20 = vector.load %arg7[%c0_16, %c0_17] : memref<16x128xf32, #tpu.memory_space<vmem>>, vector<16x128xf32>
      tpu.vector_store %arg7[%c0_16, %c0_17], %19 {strides = array<i32>} : memref<16x128xf32, #tpu.memory_space<vmem>>, vector<16x128xf32>,
    } else {
    }
    %c0 = arith.constant 0 : index
    %c0_1 = arith.constant 0 : index
    %3 = vector.load %arg4[%c0, %c0_1] : memref<512x128xbf16, #tpu.memory_space<vmem>>, vector<512x128xbf16>
    %c0_2 = arith.constant 0 : index
    %c0_3 = arith.constant 0 : index
    %4 = vector.load %arg7[%c0_2, %c0_3] : memref<16x128xf32, #tpu.memory_space<vmem>>, vector<8x128xf32>
    %c0_4 = arith.constant 0 : index
    %c0_5 = arith.constant 0 : index
    %5 = vector.load %arg2[%c0_4, %c0_5] : memref<8x512xf32, #tpu.memory_space<vmem>>, vector<8x512xf32>
    %6 = arith.truncf %5 : vector<8x512xf32> to vector<8x512xbf16>
    %cst = arith.constant dense<0.000000e+00> : vector<8x128xf32>
    %7 = tpu.matmul %6, %3, %cst {dimension_numbers = #tpu.dot_dimension_numbers<[1], [0], [0], [1], [0, 0, 1, 1], [], []>} : vector<8x512xbf16>, vector<512x128xbf16>, vector<8x128xf32> -> vector<8x128xf32>
    %8 = arith.addf %4, %7 : vector<8x128xf32>
    %c0_6 = arith.constant 0 : index
    %c0_7 = arith.constant 0 : index
    %9 = vector.load %arg7[%c0_6, %c0_7] : memref<16x128xf32, #tpu.memory_space<vmem>>, vector<8x128xf32>
    tpu.vector_store %arg7[%c0_6, %c0_7], %8 {strides = array<i32>} : memref<16x128xf32, #tpu.memory_space<vmem>>, vector<8x128xf32>,
    %c8 = arith.constant 8 : index
    %c0_8 = arith.constant 0 : index
    %10 = vector.load %arg7[%c8, %c0_8] : memref<16x128xf32, #tpu.memory_space<vmem>>, vector<8x128xf32>
    %c0_9 = arith.constant 0 : index
    %c0_10 = arith.constant 0 : index
    %11 = vector.load %arg3[%c0_9, %c0_10] : memref<8x512xf32, #tpu.memory_space<vmem>>, vector<8x512xf32>
    %12 = arith.truncf %11 : vector<8x512xf32> to vector<8x512xbf16>
    %cst_11 = arith.constant dense<0.000000e+00> : vector<8x128xf32>
    %13 = tpu.matmul %12, %3, %cst_11 {dimension_numbers = #tpu.dot_dimension_numbers<[1], [0], [0], [1], [0, 0, 1, 1], [], []>} : vector<8x512xbf16>, vector<512x128xbf16>, vector<8x128xf32> -> vector<8x128xf32>
    %14 = arith.addf %10, %13 : vector<8x128xf32>
    %c8_12 = arith.constant 8 : index
    %c0_13 = arith.constant 0 : index
    %15 = vector.load %arg7[%c8_12, %c0_13] : memref<16x128xf32, #tpu.memory_space<vmem>>, vector<8x128xf32>
    tpu.vector_store %arg7[%c8_12, %c0_13], %14 {strides = array<i32>} : memref<16x128xf32, #tpu.memory_space<vmem>>, vector<8x128xf32>,
    %c3_i32 = arith.constant 3 : i32
    %16 = arith.cmpi eq, %arg1, %c3_i32 : i32
    %17 = arith.extui %16 : i1 to i32
    %c0_i32_14 = arith.constant 0 : i32
    %18 = arith.cmpi ne, %17, %c0_i32_14 : i32
    scf.if %18 {
      %c0_15 = arith.constant 0 : index
      %c0_16 = arith.constant 0 : index
      %19 = vector.load %arg7[%c0_15, %c0_16] : memref<16x128xf32, #tpu.memory_space<vmem>>, vector<16x128xf32>
      %c0_17 = arith.constant 0 : index
      %c0_18 = arith.constant 0 : index
      %20 = vector.load %arg5[%c0_17, %c0_18] : memref<1x128xf32, #tpu.memory_space<vmem>>, vector<1x128xf32>
      %c0_19 = arith.constant 0 : index
      %c0_20 = arith.constant 0 : index
      %21 = vector.load %arg6[%c0_19, %c0_20] : memref<1x128xf32, #tpu.memory_space<vmem>>, vector<1x128xf32>
      %22 = vector.shape_cast %19 : vector<16x128xf32> to vector<2x8x128xf32>
      %cst_21 = arith.constant dense<0.000000e+00> : vector<2x128xf32>
      %23 = vector.multi_reduction <add>, %22, %cst_21 [1] : vector<2x8x128xf32> to vector<2x128xf32>
      %24 = vector.shape_cast %23 : vector<2x128xf32> to vector<2x1x128xf32>
      %cst_22 = arith.constant 8.000000e+00 : f32
      %25 = vector.broadcast %cst_22 : f32 to vector<2x1x128xf32>
      %26 = arith.divf %24, %25 : vector<2x1x128xf32>
      %27 = vector.broadcast %26 : vector<2x1x128xf32> to vector<2x8x128xf32>
      %28 = arith.subf %22, %27 : vector<2x8x128xf32>
      %29 = arith.mulf %28, %28 : vector<2x8x128xf32>
      %cst_23 = arith.constant dense<0.000000e+00> : vector<2x128xf32>
      %30 = vector.multi_reduction <add>, %29, %cst_23 [1] : vector<2x8x128xf32> to vector<2x128xf32>
      %31 = vector.shape_cast %30 : vector<2x128xf32> to vector<2x1x128xf32>
      %cst_24 = arith.constant 0.000000e+00 : f32
      %32 = vector.broadcast %cst_24 : f32 to vector<2x1x128xf32>
      %33 = arith.mulf %32, %26 : vector<2x1x128xf32>
      %34 = arith.mulf %33, %26 : vector<2x1x128xf32>
      %35 = arith.subf %31, %34 : vector<2x1x128xf32>
      %cst_25 = arith.constant 8.000000e+00 : f32
      %36 = vector.broadcast %cst_25 : f32 to vector<2x1x128xf32>
      %37 = arith.divf %35, %36 : vector<2x1x128xf32>
      %cst_26 = arith.constant 9.99999974E-6 : f32
      %38 = vector.broadcast %cst_26 : f32 to vector<2x1x128xf32>
      %39 = arith.addf %37, %38 : vector<2x1x128xf32>
      %40 = math.rsqrt %39 : vector<2x1x128xf32>
      %41 = vector.broadcast %40 : vector<2x1x128xf32> to vector<2x8x128xf32>
      %42 = arith.mulf %28, %41 : vector<2x8x128xf32>
      %43 = vector.shape_cast %20 : vector<1x128xf32> to vector<1x1x128xf32>
      %44 = vector.broadcast %43 : vector<1x1x128xf32> to vector<2x8x128xf32>
      %45 = arith.mulf %42, %44 : vector<2x8x128xf32>
      %46 = vector.shape_cast %21 : vector<1x128xf32> to vector<1x1x128xf32>
      %47 = vector.broadcast %46 : vector<1x1x128xf32> to vector<2x8x128xf32>
      %48 = arith.addf %45, %47 : vector<2x8x128xf32>
      %cst_27 = arith.constant 0.000000e+00 : f32
      %49 = vector.broadcast %cst_27 : f32 to vector<2x8x128xf32>
      %50 = arith.maximumf %48, %49 : vector<2x8x128xf32>
      %51 = vector.shape_cast %50 : vector<2x8x128xf32> to vector<16x128xf32>
      %c0_28 = arith.constant 0 : index
      %c0_29 = arith.constant 0 : index
      %52 = vector.load %arg7[%c0_28, %c0_29] : memref<16x128xf32, #tpu.memory_space<vmem>>, vector<16x128xf32>
      tpu.vector_store %arg7[%c0_28, %c0_29], %51 {strides = array<i32>} : memref<16x128xf32, #tpu.memory_space<vmem>>, vector<16x128xf32>,
    } else {
    }
    return
  }
  func.func @transform_0(%arg0: i32, %arg1: i32) -> (i32, i32) {
    %c0_i32 = arith.constant 0 : i32
    %c0_i32_0 = arith.constant 0 : i32
    return %c0_i32, %arg1 : i32, i32
  }
  func.func @transform_1(%arg0: i32, %arg1: i32) -> (i32, i32) {
    %c0_i32 = arith.constant 0 : i32
    %c0_i32_0 = arith.constant 0 : i32
    return %c0_i32, %arg1 : i32, i32
  }
  func.func @transform_2(%arg0: i32, %arg1: i32) -> (i32, i32) {
    %c0_i32 = arith.constant 0 : i32
    return %arg1, %arg0 : i32, i32
  }
  func.func @transform_3(%arg0: i32, %arg1: i32) -> (i32, i32) {
    %c0_i32 = arith.constant 0 : i32
    %c0_i32_0 = arith.constant 0 : i32
    return %c0_i32, %arg0 : i32, i32
  }
  func.func @transform_4(%arg0: i32, %arg1: i32) -> (i32, i32) {
    %c0_i32 = arith.constant 0 : i32
    %c0_i32_0 = arith.constant 0 : i32
    return %c0_i32, %arg0 : i32, i32
  }
  func.func @transform_5(%arg0: i32, %arg1: i32) -> (i32, i32) {
    %c0_i32 = arith.constant 0 : i32
    %c0_i32_0 = arith.constant 0 : i32
    return %c0_i32, %arg0 : i32, i32
  }
}

module attributes {stable_mosaic.version = 11 : i64} {
  func.func @_head_kernel(%arg0: memref<16x128xf32, #tpu.memory_space<vmem>>, %arg1: memref<128x128xbf16, #tpu.memory_space<vmem>>, %arg2: memref<1x128xf32, #tpu.memory_space<vmem>>, %arg3: memref<1x128xf32, #tpu.memory_space<vmem>>, %arg4: memref<128x128xbf16, #tpu.memory_space<vmem>>, %arg5: memref<16x128xf32, #tpu.memory_space<vmem>>) attributes {dimension_semantics = [], scalar_prefetch = 0 : i64, scratch_operands = 0 : i64, tpu.core_type = #tpu.core_type<tc>} {
    %c0 = arith.constant 0 : index
    %c0_0 = arith.constant 0 : index
    %0 = vector.load %arg0[%c0, %c0_0] : memref<16x128xf32, #tpu.memory_space<vmem>>, vector<16x128xf32>
    %1 = arith.truncf %0 : vector<16x128xf32> to vector<16x128xbf16>
    %c0_1 = arith.constant 0 : index
    %c0_2 = arith.constant 0 : index
    %2 = vector.load %arg1[%c0_1, %c0_2] : memref<128x128xbf16, #tpu.memory_space<vmem>>, vector<128x128xbf16>
    %cst = arith.constant dense<0.000000e+00> : vector<16x128xf32>
    %3 = tpu.matmul %1, %2, %cst {dimension_numbers = #tpu.dot_dimension_numbers<[1], [0], [0], [1], [0, 0, 1, 1], [], []>} : vector<16x128xbf16>, vector<128x128xbf16>, vector<16x128xf32> -> vector<16x128xf32>
    %c0_3 = arith.constant 0 : index
    %c0_4 = arith.constant 0 : index
    %4 = vector.load %arg2[%c0_3, %c0_4] : memref<1x128xf32, #tpu.memory_space<vmem>>, vector<1x128xf32>
    %c0_5 = arith.constant 0 : index
    %c0_6 = arith.constant 0 : index
    %5 = vector.load %arg3[%c0_5, %c0_6] : memref<1x128xf32, #tpu.memory_space<vmem>>, vector<1x128xf32>
    %6 = vector.shape_cast %3 : vector<16x128xf32> to vector<2x8x128xf32>
    %cst_7 = arith.constant dense<0.000000e+00> : vector<2x128xf32>
    %7 = vector.multi_reduction <add>, %6, %cst_7 [1] : vector<2x8x128xf32> to vector<2x128xf32>
    %8 = vector.shape_cast %7 : vector<2x128xf32> to vector<2x1x128xf32>
    %cst_8 = arith.constant 8.000000e+00 : f32
    %9 = vector.broadcast %cst_8 : f32 to vector<2x1x128xf32>
    %10 = arith.divf %8, %9 : vector<2x1x128xf32>
    %11 = vector.broadcast %10 : vector<2x1x128xf32> to vector<2x8x128xf32>
    %12 = arith.subf %6, %11 : vector<2x8x128xf32>
    %13 = arith.mulf %12, %12 : vector<2x8x128xf32>
    %cst_9 = arith.constant dense<0.000000e+00> : vector<2x128xf32>
    %14 = vector.multi_reduction <add>, %13, %cst_9 [1] : vector<2x8x128xf32> to vector<2x128xf32>
    %15 = vector.shape_cast %14 : vector<2x128xf32> to vector<2x1x128xf32>
    %cst_10 = arith.constant 0.000000e+00 : f32
    %16 = vector.broadcast %cst_10 : f32 to vector<2x1x128xf32>
    %17 = arith.mulf %16, %10 : vector<2x1x128xf32>
    %18 = arith.mulf %17, %10 : vector<2x1x128xf32>
    %19 = arith.subf %15, %18 : vector<2x1x128xf32>
    %cst_11 = arith.constant 8.000000e+00 : f32
    %20 = vector.broadcast %cst_11 : f32 to vector<2x1x128xf32>
    %21 = arith.divf %19, %20 : vector<2x1x128xf32>
    %cst_12 = arith.constant 9.99999974E-6 : f32
    %22 = vector.broadcast %cst_12 : f32 to vector<2x1x128xf32>
    %23 = arith.addf %21, %22 : vector<2x1x128xf32>
    %24 = math.rsqrt %23 : vector<2x1x128xf32>
    %25 = vector.broadcast %24 : vector<2x1x128xf32> to vector<2x8x128xf32>
    %26 = arith.mulf %12, %25 : vector<2x8x128xf32>
    %27 = vector.shape_cast %4 : vector<1x128xf32> to vector<1x1x128xf32>
    %28 = vector.broadcast %27 : vector<1x1x128xf32> to vector<2x8x128xf32>
    %29 = arith.mulf %26, %28 : vector<2x8x128xf32>
    %30 = vector.shape_cast %5 : vector<1x128xf32> to vector<1x1x128xf32>
    %31 = vector.broadcast %30 : vector<1x1x128xf32> to vector<2x8x128xf32>
    %32 = arith.addf %29, %31 : vector<2x8x128xf32>
    %cst_13 = arith.constant 0.000000e+00 : f32
    %33 = vector.broadcast %cst_13 : f32 to vector<2x8x128xf32>
    %34 = arith.maximumf %32, %33 : vector<2x8x128xf32>
    %35 = vector.shape_cast %34 : vector<2x8x128xf32> to vector<16x128xf32>
    %36 = arith.truncf %35 : vector<16x128xf32> to vector<16x128xbf16>
    %c0_14 = arith.constant 0 : index
    %c0_15 = arith.constant 0 : index
    %37 = vector.load %arg4[%c0_14, %c0_15] : memref<128x128xbf16, #tpu.memory_space<vmem>>, vector<128x128xbf16>
    %cst_16 = arith.constant dense<0.000000e+00> : vector<16x128xf32>
    %38 = tpu.matmul %36, %37, %cst_16 {dimension_numbers = #tpu.dot_dimension_numbers<[1], [0], [0], [1], [0, 0, 1, 1], [], []>} : vector<16x128xbf16>, vector<128x128xbf16>, vector<16x128xf32> -> vector<16x128xf32>
    %c0_17 = arith.constant 0 : index
    %c0_18 = arith.constant 0 : index
    %39 = vector.load %arg5[%c0_17, %c0_18] : memref<16x128xf32, #tpu.memory_space<vmem>>, vector<16x128xf32>
    tpu.vector_store %arg5[%c0_17, %c0_18], %38 {strides = array<i32>} : memref<16x128xf32, #tpu.memory_space<vmem>>, vector<16x128xf32>,
    return
  }
}

</mosaic_0001>

<llo_original>
// kernel: projector_fused.3
$region0: #{projector_fused.3}
  #allocation0 [shape = 'u32[]', space=smem, size = 0x4, offset = 0x4, fixed_abs, tag = 'smem constant byte address 0x4 - core index']
  #allocation1 [shape = 'u32[144,128]{1,0:T(1,128)}', space=vmem, size = 0x12000, scoped, tag = 'internal scratch']
  %s0 = inlined_call_operand.vmem [shape: f32[16,128], index: 0, kind: input, shape index: {}]
  %s1 = inlined_call_operand.vmem [shape: bf16[128,128], index: 1, kind: input, shape index: {}]
  %s2 = inlined_call_operand.vmem [shape: f32[1,128], index: 2, kind: input, shape index: {}]
  %s3 = inlined_call_operand.vmem [shape: f32[1,128], index: 3, kind: input, shape index: {}]
  %s4 = inlined_call_operand.vmem [shape: bf16[128,128], index: 4, kind: input, shape index: {}]
  %s5 = inlined_call_operand.hbm [shape: f32[16,128], index: 5, kind: output, shape index: {}]
  %s6 = sld [smem:[#allocation0]]
  $region30: #{projector_fused.3} parent=0
    _
  %s8 = ssub.s32 1, %s6
  %s9 = scalar_select 0, %s8, %s6
  $region1: #{projector_fused.3} parent=0
    #allocation2 [shape = 'u8[8192]{0}', space=vmem, size = 0x2000, scoped, tag = 'output window, operand 0, single buffered']
    #allocation3 [shape = 's32[1]{0}', space=sflag, size = 0x4, scoped, tag = 'scoped memory for projector_fused.3']
    %10 = vsyncpa [#allocation3], 0
    // Predicated region
    $region2: #{projector_fused.3} parent=1 // pred_check
      _
    $region3: #{projector_fused.3} parent=1 // pred_check_branch
      %12 = sbr.rel (0) target = $region5
    $region4: #{projector_fused.3} parent=1 // pred_region
      _
    $region5: #{projector_fused.3} parent=1 // pred_fallthru
      _
    // Predicated region
    $region6: #{projector_fused.3} parent=1 // pred_check
      _
    $region7: #{projector_fused.3} parent=1 // pred_check_branch
      %14 = sbr.rel (0) target = $region9
    $region8: #{projector_fused.3} parent=1 // pred_region
      _
    $region9: #{projector_fused.3} parent=1 // pred_fallthru
      _
    // Predicated region
    $region10: #{projector_fused.3} parent=1 // pred_check
      _
    $region11: #{projector_fused.3} parent=1 // pred_check_branch
      %16 = sbr.rel (0) target = $region13
    $region12: #{projector_fused.3} parent=1 // pred_region
      _
    $region13: #{projector_fused.3} parent=1 // pred_fallthru
      _
    // Predicated region
    $region14: #{projector_fused.3} parent=1 // pred_check
      _
    $region15: #{projector_fused.3} parent=1 // pred_check_branch
      %18 = sbr.rel (0) target = $region17
    $region16: #{projector_fused.3} parent=1 // pred_region
      _
    $region17: #{projector_fused.3} parent=1 // pred_fallthru
      _
    // Predicated region
    $region18: #{projector_fused.3} parent=1 // pred_check
      _
    $region19: #{projector_fused.3} parent=1 // pred_check_branch
      %20 = sbr.rel (0) target = $region21
    $region20: #{projector_fused.3} parent=1 // pred_region
      _
    $region21: #{projector_fused.3} parent=1 // pred_fallthru
      _
    %v22 = vld [vmem:[%s0] sm:$0xff]
    %v23 = vld [vmem:[%s0 + $0x8] sm:$0xff]
    %v24 = vpack.c.bf16 %v23, %v22
    %v25 = vld [vmem:[%s1] sm:$0xf]
    %v26 = vld [vmem:[%s1 + $0x4] sm:$0xf]
    %v27 = vld [vmem:[%s1 + $0x8] sm:$0xf]
    %v28 = vld [vmem:[%s1 + $0xc] sm:$0xf]
    %v29 = vld [vmem:[%s1 + $0x10] sm:$0xf]
    %v30 = vld [vmem:[%s1 + $0x14] sm:$0xf]
    %v31 = vld [vmem:[%s1 + $0x18] sm:$0xf]
    %v32 = vld [vmem:[%s1 + $0x1c] sm:$0xf]
    %v33 = vld [vmem:[%s1 + $0x20] sm:$0xf]
    %v34 = vld [vmem:[%s1 + $0x24] sm:$0xf]
    %v35 = vld [vmem:[%s1 + $0x28] sm:$0xf]
    %v36 = vld [vmem:[%s1 + $0x2c] sm:$0xf]
    %v37 = vld [vmem:[%s1 + $0x30] sm:$0xf]
    %v38 = vld [vmem:[%s1 + $0x34] sm:$0xf]
    %v39 = vld [vmem:[%s1 + $0x38] sm:$0xf]
    %v40 = vld [vmem:[%s1 + $0x3c] sm:$0xf]
    %v57 = vunpack.c.l.b16 %v25
    %v58 = vunpack.c.l.b16 %v26
    %v59 = vunpack.c.l.b16 %v27
    %v60 = vunpack.c.l.b16 %v28
    %v61 = vunpack.c.l.b16 %v29
    %v62 = vunpack.c.l.b16 %v30
    %v63 = vunpack.c.l.b16 %v31
    %v64 = vunpack.c.l.b16 %v32
    %v65 = vunpack.c.l.b16 %v33
    %v66 = vunpack.c.l.b16 %v34
    %v67 = vunpack.c.l.b16 %v35
    %v68 = vunpack.c.l.b16 %v36
    %v69 = vunpack.c.l.b16 %v37
    %v70 = vunpack.c.l.b16 %v38
    %v71 = vunpack.c.l.b16 %v39
    %v72 = vunpack.c.l.b16 %v40
    %v73 = vpack.c.b16 %v58, %v57
    %v74 = vpack.c.b16 %v60, %v59
    %v75 = vpack.c.b16 %v62, %v61
    %v76 = vpack.c.b16 %v64, %v63
    %v77 = vpack.c.b16 %v66, %v65
    %v78 = vpack.c.b16 %v68, %v67
    %v79 = vpack.c.b16 %v70, %v69
    %v80 = vpack.c.b16 %v72, %v71
    %89 = vmatprep.subr.bf16.mxu0 0
    %90 = vmatpush1.bf16.msra.mxu0 %v73
    %91 = vmatprep.subr.bf16.mxu0 0
    %92 = vmatpush1.bf16.msra.mxu0 %v74
    %93 = vmatprep.subr.bf16.mxu0 0
    %94 = vmatpush1.bf16.msra.mxu0 %v75
    %95 = vmatprep.subr.bf16.mxu0 0
    %96 = vmatpush1.bf16.msra.mxu0 %v76
    %97 = vmatprep.subr.bf16.mxu0 0
    %98 = vmatpush1.bf16.msra.mxu0 %v77
    %99 = vmatprep.subr.bf16.mxu0 0
    %100 = vmatpush1.bf16.msra.mxu0 %v78
    %101 = vmatprep.subr.bf16.mxu0 0
    %102 = vmatpush1.bf16.msra.mxu0 %v79
    %103 = vmatprep.subr.bf16.mxu0 0
    %104 = vmatpush1.bf16.msra.mxu0 %v80
    %105 = vmatprep.subr.bf16.mxu0 0
    %106 = vmatpush1.bf16.msra.mxu0 0
    %107 = vmatprep.subr.bf16.mxu0 0
    %108 = vmatpush1.bf16.msra.mxu0 0
    %109 = vmatprep.subr.bf16.mxu0 0
    %110 = vmatpush1.bf16.msra.mxu0 0
    %111 = vmatprep.subr.bf16.mxu0 0
    %112 = vmatpush1.bf16.msra.mxu0 0
    %113 = vmatprep.subr.bf16.mxu0 0
    %114 = vmatpush1.bf16.msra.mxu0 0
    %115 = vmatprep.subr.bf16.mxu0 0
    %116 = vmatpush1.bf16.msra.mxu0 0
    %117 = vmatprep.subr.bf16.mxu0 0
    %118 = vmatpush1.bf16.msra.mxu0 0
    %119 = vmatprep.subr.bf16.mxu0 0
    %120 = vmatpush1.bf16.msra.mxu0 0
    %121 = vmatprep.mubr.bf16.mxu0 0
    %122 = vmatmul.mubr.bf16.gmra.mrb[0].mxu0 %v24
    %v123 = vpop.f32.mrb[0].mxu0
    %v124 = vadd.f32 0.0, %v123
    %v125 = vpop.f32.mrb[0].mxu0
    %v126 = vpop.f32.mrb[0].mxu0
    %v127 = vadd.f32 0.0, %v126
    %v128 = vpop.f32.mrb[0].mxu0
    %129 = vdwg.mxu0
    %v130 = vld [vmem:[%s2] sm:$0x1]
    %v131 = vld [vmem:[%s3] sm:$0x1]
    %v132 = vrot.slane %v124, 4
    %v133 = vadd.f32 %v124, %v132
    %v134 = vrot.slane %v133, 2
    %v135 = vadd.f32 %v133, %v134
    %v136 = vrot.slane %v135, 1
    %v137 = vadd.f32 %v135, %v136
    %v138 = vrot.slane %v127, 4
    %v139 = vadd.f32 %v127, %v138
    %v140 = vrot.slane %v139, 2
    %v141 = vadd.f32 %v139, %v140
    %v142 = vrot.slane %v141, 1
    %v143 = vadd.f32 %v141, %v142
    %v144 = vrcp.pop 8.0
    %v145 = vmul.f32 %v137, %v144
    %v146 = vmul.f32 %v143, %v144
    %v147 = vsub.f32 %v124, %v145
    %v148 = vsub.f32 %v127, %v146
    %v149 = vmul.f32 %v147, %v147
    %v150 = vmul.f32 %v148, %v148
    %v151 = vrot.slane %v149, 4
    %v152 = vadd.f32 %v149, %v151
    %v153 = vrot.slane %v152, 2
    %v154 = vadd.f32 %v152, %v153
    %v155 = vrot.slane %v154, 1
    %v156 = vadd.f32 %v154, %v155
    %v157 = vrot.slane %v150, 4
    %v158 = vadd.f32 %v150, %v157
    %v159 = vrot.slane %v158, 2
    %v160 = vadd.f32 %v158, %v159
    %v161 = vrot.slane %v160, 1
    %v162 = vadd.f32 %v160, %v161
    %v163 = vmul.f32 %v145, 0.0
    %v164 = vmul.f32 %v146, 0.0
    %v165 = vmul.f32 %v163, %v145
    %v166 = vmul.f32 %v164, %v146
    %v167 = vsub.f32 %v156, %v165
    %v168 = vsub.f32 %v162, %v166
    %v169 = vmul.f32 %v167, %v144
    %v170 = vmul.f32 %v168, %v144
    %v171 = vadd.f32 %v169, 1e-05
    %v172 = vadd.f32 %v170, 1e-05
    %v173 = vrsqrt.pop %v171
    %v174 = vrsqrt.pop %v172
    %v175 = vmul.f32 %v147, %v173
    %v176 = vmul.f32 %v148, %v174
    %v178 = vlaneseq
    %v179 = vshrl.u32 %v178, 7
    %v180 = vsub.s32 0, %v179
    %v181 = vrot.slane %v130, %v180
    %v183 = vmul.f32 %v175, %v181
    %v184 = vmul.f32 %v176, %v181
    %v186 = vlaneseq
    %v187 = vshrl.u32 %v186, 7
    %v188 = vsub.s32 0, %v187
    %v189 = vrot.slane %v131, %v188
    %v191 = vadd.f32 %v183, %v189
    %v192 = vadd.f32 %v184, %v189
    %v193 = vmax.f32 %v191, 0.0
    %v194 = vmax.f32 %v192, 0.0
    %v195 = vpack.c.bf16 %v194, %v193
    %v196 = vld [vmem:[%s4] sm:$0xf]
    %v197 = vld [vmem:[%s4 + $0x4] sm:$0xf]
    %v198 = vld [vmem:[%s4 + $0x8] sm:$0xf]
    %v199 = vld [vmem:[%s4 + $0xc] sm:$0xf]
    %v200 = vld [vmem:[%s4 + $0x10] sm:$0xf]
    %v201 = vld [vmem:[%s4 + $0x14] sm:$0xf]
    %v202 = vld [vmem:[%s4 + $0x18] sm:$0xf]
    %v203 = vld [vmem:[%s4 + $0x1c] sm:$0xf]
    %v204 = vld [vmem:[%s4 + $0x20] sm:$0xf]
    %v205 = vld [vmem:[%s4 + $0x24] sm:$0xf]
    %v206 = vld [vmem:[%s4 + $0x28] sm:$0xf]
    %v207 = vld [vmem:[%s4 + $0x2c] sm:$0xf]
    %v208 = vld [vmem:[%s4 + $0x30] sm:$0xf]
    %v209 = vld [vmem:[%s4 + $0x34] sm:$0xf]
    %v210 = vld [vmem:[%s4 + $0x38] sm:$0xf]
    %v211 = vld [vmem:[%s4 + $0x3c] sm:$0xf]
    %v228 = vunpack.c.l.b16 %v196
    %v229 = vunpack.c.l.b16 %v197
    %v230 = vunpack.c.l.b16 %v198
    %v231 = vunpack.c.l.b16 %v199
    %v232 = vunpack.c.l.b16 %v200
    %v233 = vunpack.c.l.b16 %v201
    %v234 = vunpack.c.l.b16 %v202
    %v235 = vunpack.c.l.b16 %v203
    %v236 = vunpack.c.l.b16 %v204
    %v237 = vunpack.c.l.b16 %v205
    %v238 = vunpack.c.l.b16 %v206
    %v239 = vunpack.c.l.b16 %v207
    %v240 = vunpack.c.l.b16 %v208
    %v241 = vunpack.c.l.b16 %v209
    %v242 = vunpack.c.l.b16 %v210
    %v243 = vunpack.c.l.b16 %v211
    %v244 = vpack.c.b16 %v229, %v228
    %v245 = vpack.c.b16 %v231, %v230
    %v246 = vpack.c.b16 %v233, %v232
    %v247 = vpack.c.b16 %v235, %v234
    %v248 = vpack.c.b16 %v237, %v236
    %v249 = vpack.c.b16 %v239, %v238
    %v250 = vpack.c.b16 %v241, %v240
    %v251 = vpack.c.b16 %v243, %v242
    %260 = vmatprep.subr.bf16.mxu0 0
    %261 = vmatpush1.bf16.msra.mxu0 %v244
    %262 = vmatprep.subr.bf16.mxu0 0
    %263 = vmatpush1.bf16.msra.mxu0 %v245
    %264 = vmatprep.subr.bf16.mxu0 0
    %265 = vmatpush1.bf16.msra.mxu0 %v246
    %266 = vmatprep.subr.bf16.mxu0 0
    %267 = vmatpush1.bf16.msra.mxu0 %v247
    %268 = vmatprep.subr.bf16.mxu0 0
    %269 = vmatpush1.bf16.msra.mxu0 %v248
    %270 = vmatprep.subr.bf16.mxu0 0
    %271 = vmatpush1.bf16.msra.mxu0 %v249
    %272 = vmatprep.subr.bf16.mxu0 0
    %273 = vmatpush1.bf16.msra.mxu0 %v250
    %274 = vmatprep.subr.bf16.mxu0 0
    %275 = vmatpush1.bf16.msra.mxu0 %v251
    %276 = vmatprep.subr.bf16.mxu0 0
    %277 = vmatpush1.bf16.msra.mxu0 0
    %278 = vmatprep.subr.bf16.mxu0 0
    %279 = vmatpush1.bf16.msra.mxu0 0
    %280 = vmatprep.subr.bf16.mxu0 0
    %281 = vmatpush1.bf16.msra.mxu0 0
    %282 = vmatprep.subr.bf16.mxu0 0
    %283 = vmatpush1.bf16.msra.mxu0 0
    %284 = vmatprep.subr.bf16.mxu0 0
    %285 = vmatpush1.bf16.msra.mxu0 0
    %286 = vmatprep.subr.bf16.mxu0 0
    %287 = vmatpush1.bf16.msra.mxu0 0
    %288 = vmatprep.subr.bf16.mxu0 0
    %289 = vmatpush1.bf16.msra.mxu0 0
    %290 = vmatprep.subr.bf16.mxu0 0
    %291 = vmatpush1.bf16.msra.mxu0 0
    %292 = vmatprep.mubr.bf16.mxu0 0
    %293 = vmatmul.mubr.bf16.gmra.mrb[0].mxu0 %v195
    %v294 = vpop.f32.mrb[0].mxu0
    %v295 = vadd.f32 0.0, %v294
    %v296 = vpop.f32.mrb[0].mxu0
    %v297 = vpop.f32.mrb[0].mxu0
    %v298 = vadd.f32 0.0, %v297
    %v299 = vpop.f32.mrb[0].mxu0
    %300 = vdwg.mxu0
    %301 = vst [vmem:[#allocation2] sm:$0xff] %v295
    %302 = vst [vmem:[#allocation2 + $0x8] sm:$0xff] %v298
    // Predicated region
    $region22: #{projector_fused.3} parent=1 // pred_check
      _
    $region23: #{projector_fused.3} parent=1 // pred_check_branch
      %304 = sbr.rel (0) target = $region25
    $region24: #{projector_fused.3} parent=1 // pred_region
      %s306 = ssub.s32 256, 256
      %307 = vsyncadd [#allocation3], %s306
      %s308 = sshll.u32 [#allocation2], 4
      %s309 = int_to_ptr.vmem [resolvable:$true] %s308
      %314 = dma.vmem_to_hbm [thread:$0]  %s309, 256, %s5, [#allocation3], 128, 128, 8
    $region25: #{projector_fused.3} parent=1 // pred_fallthru
      _
    // Predicated region
    $region26: #{projector_fused.3} parent=1 // pred_check
      _
    $region27: #{projector_fused.3} parent=1 // pred_check_branch
      %316 = sbr.rel (0) target = $region29
    $region28: #{projector_fused.3} parent=1 // pred_region
      %317 = dma.done [#allocation3], 256
    $region29: #{projector_fused.3} parent=1 // pred_fallthru
      _
    %318 = vsyncpa [#allocation3], 1

// kernel: projector_fused.2
$region0: #{projector_fused.2}
  #allocation0 [shape = 'u32[]', space=smem, size = 0x4, offset = 0x4, fixed_abs, tag = 'smem constant byte address 0x4 - core index']
  #allocation1 [shape = 'u32[144,128]{1,0:T(1,128)}', space=vmem, size = 0x12000, scoped, tag = 'internal scratch']
  %s0 = inlined_call_operand.hbm [shape: f32[8,2048], index: 0, kind: input, shape index: {}]
  %s1 = inlined_call_operand.hbm [shape: f32[8,2048], index: 1, kind: input, shape index: {}]
  %s2 = inlined_call_operand.hbm [shape: bf16[2048,128], index: 2, kind: input, shape index: {}]
  %s3 = inlined_call_operand.vmem [shape: f32[1,128], index: 3, kind: input, shape index: {}]
  %s4 = inlined_call_operand.vmem [shape: f32[1,128], index: 4, kind: input, shape index: {}]
  %s5 = inlined_call_operand.vmem [shape: f32[16,128], index: 5, kind: output, shape index: {}]
  %s6 = sld [smem:[#allocation0]]
  $region73: #{projector_fused.2} parent=0
    _
  %s8 = ssub.s32 1, %s6
  %s9 = scalar_select 0, %s8, %s6
  $region1: #{projector_fused.2} parent=0
    #allocation2 [shape = 'u8[32768]{0}', space=vmem, size = 0x8000, scoped, tag = 'input window, operand 0']
    #allocation3 [shape = 's32[2]{0}', space=sflag, size = 0x8, scoped, tag = 'scoped memory for projector_fused.2']
    #allocation4 [shape = 'u8[32768]{0}', space=vmem, size = 0x8000, scoped, tag = 'input window, operand 1']
    #allocation5 [shape = 's32[2]{0}', space=sflag, size = 0x8, scoped, tag = 'scoped memory for projector_fused.2']
    #allocation6 [shape = 'u8[262144]{0}', space=vmem, size = 0x40000, scoped, tag = 'input window, operand 2']
    %10 = vsyncpa [#allocation3], 0
    %s11 = scalar_lea.sflag [#allocation3], 1
    %12 = vsyncpa %s11, 0
    %13 = vsyncpa [#allocation5], 0
    %s14 = scalar_lea.sflag [#allocation5], 1
    %15 = vsyncpa %s14, 0
    loop: start=0, step=1, limit=6
    $region2: #{projector_fused.2} parent=1 // loop_pre_header
      _
    $region3: #{projector_fused.2} parent=1 // loop_header
      %s17 = sphi 0, %s21
      %p18 = scmp.ge.s32.totalorder %s17, 6
      %s24 = sphi 0, %s36
      %s25 = sphi 0, %s32
      %s26 = sphi 0, %s24
      %s27 = sphi 0, %s25
      %s28 = sphi 0, %s26
      %s29 = sphi 0, %s27
      %s39 = sphi 0, %s41
      %s42 = sphi 0, %s39
      %s43 = sphi 0, %s42
      %s59 = sphi 0, %s43
      %s65 = sphi 0, %s67
      %s68 = sphi 0, %s65
      %s69 = sphi 0, %s68
      %s85 = sphi 0, %s69
      %s93 = sphi 0, %s95
      %s96 = sphi 0, %s93
      %s97 = sphi 0, %s96
      %s113 = sphi 0, %s97
      %s119 = sphi 0, %s121
      %s122 = sphi 0, %s119
      %s123 = sphi 0, %s122
      %s139 = sphi 0, %s123
      %s145 = sphi 0, %s147
      %s148 = sphi 0, %s145
      %s149 = sphi 0, %s148
      %s165 = sphi 0, %s149
      %s171 = sphi 0, %s173
      %s174 = sphi 0, %s171
      %s175 = sphi 0, %s174
      %s191 = sphi 0, %s175
    $region4: #{projector_fused.2} parent=1 // loop_header_branch
      %20 = sbr.rel (%p18) target = $region8
    $region5: #{projector_fused.2} parent=1 // loop_body
      %s22 = ssub.s32 %s17, 1
      %s23 = ssub.s32 %s17, 2
      %s30 = sadd.s32 1, %s25
      %p31 = scmp.ge.s32.totalorder %s30, 4
      %s32 = scalar_select %p31, 0, %s30
      %s33 = sadd.s32 1, %s24
      %s34 = scalar_select %p31, %s33, %s24
      %p35 = scmp.ge.s32.totalorder %s34, 1
      %s36 = scalar_select %p35, 0, %s34
      %s37 = ssub.s32 %s25, %s32
      %p38 = scmp.eq.s32.totalorder %s37, 0
      %s40 = sadd.s32 %s39, 1
      %s41 = scalar_select %p38, %s39, %s40
      %p44 = pneg %p38
      %p45 = scmp.eq.s32.totalorder %s17, 3
      %p46 = por %p44, %p45
      %p47 = scmp.ne.s32.totalorder %s39, %s42
      %p48 = scmp.eq.s32.totalorder %s17, 0
      %p49 = por %p47, %p48
      %p50 = scmp.ne.s32.totalorder %s39, %s42
      %p51 = scmp.eq.s32.totalorder %s22, 3
      %p52 = por %p50, %p51
      %p53 = scmp.ne.s32.totalorder %s42, %s43
      %p54 = scmp.eq.s32.totalorder %s22, 0
      %p55 = por %p53, %p54
      %p56 = scmp.ne.s32.totalorder %s42, %s43
      %p57 = scmp.eq.s32.totalorder %s23, 3
      %p58 = por %p56, %p57
      %p60 = scmp.ne.s32.totalorder %s43, %s59
      %p61 = scmp.eq.s32.totalorder %s23, 0
      %p62 = por %p60, %p61
      %s63 = ssub.s32 %s25, %s32
      %p64 = scmp.eq.s32.totalorder %s63, 0
      %s66 = sadd.s32 %s65, 1
      %s67 = scalar_select %p64, %s65, %s66
      %p70 = pneg %p64
      %p71 = scmp.eq.s32.totalorder %s17, 3
      %p72 = por %p70, %p71
      %p73 = scmp.ne.s32.totalorder %s65, %s68
      %p74 = scmp.eq.s32.totalorder %s17, 0
      %p75 = por %p73, %p74
      %p76 = scmp.ne.s32.totalorder %s65, %s68
      %p77 = scmp.eq.s32.totalorder %s22, 3
      %p78 = por %p76, %p77
      %p79 = scmp.ne.s32.totalorder %s68, %s69
      %p80 = scmp.eq.s32.totalorder %s22, 0
      %p81 = por %p79, %p80
      %p82 = scmp.ne.s32.totalorder %s68, %s69
      %p83 = scmp.eq.s32.totalorder %s23, 3
      %p84 = por %p82, %p83
      %p86 = scmp.ne.s32.totalorder %s69, %s85
      %p87 = scmp.eq.s32.totalorder %s23, 0
      %p88 = por %p86, %p87
      %s89 = ssub.s32 %s25, %s32
      %s90 = ssub.s32 %s24, %s36
      %s91 = sor.u32 %s89, %s90
      %p92 = scmp.eq.s32.totalorder %s91, 0
      %s94 = sadd.s32 %s93, 1
      %s95 = scalar_select %p92, %s93, %s94
      %p98 = pneg %p92
      %p99 = scmp.eq.s32.totalorder %s17, 3
      %p100 = por %p98, %p99
      %p101 = scmp.ne.s32.totalorder %s93, %s96
      %p102 = scmp.eq.s32.totalorder %s17, 0
      %p103 = por %p101, %p102
      %p104 = scmp.ne.s32.totalorder %s93, %s96
      %p105 = scmp.eq.s32.totalorder %s22, 3
      %p106 = por %p104, %p105
      %p107 = scmp.ne.s32.totalorder %s96, %s97
      %p108 = scmp.eq.s32.totalorder %s22, 0
      %p109 = por %p107, %p108
      %p110 = scmp.ne.s32.totalorder %s96, %s97
      %p111 = scmp.eq.s32.totalorder %s23, 3
      %p112 = por %p110, %p111
      %p114 = scmp.ne.s32.totalorder %s97, %s113
      %p115 = scmp.eq.s32.totalorder %s23, 0
      %p116 = por %p114, %p115
      %s117 = ssub.s32 %s24, %s36
      %p118 = scmp.eq.s32.totalorder %s117, 0
      %s120 = sadd.s32 %s119, 1
      %s121 = scalar_select %p118, %s119, %s120
      %p124 = pneg %p118
      %p125 = scmp.eq.s32.totalorder %s17, 3
      %p126 = por %p124, %p125
      %p127 = scmp.ne.s32.totalorder %s119, %s122
      %p128 = scmp.eq.s32.totalorder %s17, 0
      %p129 = por %p127, %p128
      %p130 = scmp.ne.s32.totalorder %s119, %s122
      %p131 = scmp.eq.s32.totalorder %s22, 3
      %p132 = por %p130, %p131
      %p133 = scmp.ne.s32.totalorder %s122, %s123
      %p134 = scmp.eq.s32.totalorder %s22, 0
      %p135 = por %p133, %p134
      %p136 = scmp.ne.s32.totalorder %s122, %s123
      %p137 = scmp.eq.s32.totalorder %s23, 3
      %p138 = por %p136, %p137
      %p140 = scmp.ne.s32.totalorder %s123, %s139
      %p141 = scmp.eq.s32.totalorder %s23, 0
      %p142 = por %p140, %p141
      %s143 = ssub.s32 %s24, %s36
      %p144 = scmp.eq.s32.totalorder %s143, 0
      %s146 = sadd.s32 %s145, 1
      %s147 = scalar_select %p144, %s145, %s146
      %p150 = pneg %p144
      %p151 = scmp.eq.s32.totalorder %s17, 3
      %p152 = por %p150, %p151
      %p153 = scmp.ne.s32.totalorder %s145, %s148
      %p154 = scmp.eq.s32.totalorder %s17, 0
      %p155 = por %p153, %p154
      %p156 = scmp.ne.s32.totalorder %s145, %s148
      %p157 = scmp.eq.s32.totalorder %s22, 3
      %p158 = por %p156, %p157
      %p159 = scmp.ne.s32.totalorder %s148, %s149
      %p160 = scmp.eq.s32.totalorder %s22, 0
      %p161 = por %p159, %p160
      %p162 = scmp.ne.s32.totalorder %s148, %s149
      %p163 = scmp.eq.s32.totalorder %s23, 3
      %p164 = por %p162, %p163
      %p166 = scmp.ne.s32.totalorder %s149, %s165
      %p167 = scmp.eq.s32.totalorder %s23, 0
      %p168 = por %p166, %p167
      %s169 = ssub.s32 %s24, %s36
      %p170 = scmp.eq.s32.totalorder %s169, 0
      %s172 = sadd.s32 %s171, 1
      %s173 = scalar_select %p170, %s171, %s172
      %p176 = pneg %p170
      %p177 = scmp.eq.s32.totalorder %s17, 3
      %p178 = por %p176, %p177
      %p179 = scmp.ne.s32.totalorder %s171, %s174
      %p180 = scmp.eq.s32.totalorder %s17, 0
      %p181 = por %p179, %p180
      %p182 = scmp.ne.s32.totalorder %s171, %s174
      %p183 = scmp.eq.s32.totalorder %s22, 3
      %p184 = por %p182, %p183
      %p185 = scmp.ne.s32.totalorder %s174, %s175
      %p186 = scmp.eq.s32.totalorder %s22, 0
      %p187 = por %p185, %p186
      %p188 = scmp.ne.s32.totalorder %s174, %s175
      %p189 = scmp.eq.s32.totalorder %s23, 3
      %p190 = por %p188, %p189
      %p192 = scmp.ne.s32.totalorder %s175, %s191
      %p193 = scmp.eq.s32.totalorder %s23, 0
      %p194 = por %p192, %p193
      %p195 = scmp.le.s32.totalorder 1, %s17
      %p196 = scmp.lt.s32.totalorder %s17, 5
      %p197 = pnand %p195, %p196
      %p198 = pneg %p197
      // Predicated region
      $region9: #{projector_fused.2} parent=5 // pred_check
        _
      $region10: #{projector_fused.2} parent=5 // pred_check_branch
        %200 = sbr.rel (%p197) target = $region12
      $region11: #{projector_fused.2} parent=5 // pred_region
        %s201 = ssub.s32 %s17, 1
        // Predicated region
        $region13: #{projector_fused.2} parent=11 // pred_check
          %p202 = pneg %p135
        $region14: #{projector_fused.2} parent=11 // pred_check_branch
          %204 = sbr.rel (%p202) target = $region16
        $region15: #{projector_fused.2} parent=11 // pred_region
          %p205 = scmp.lt.s32.totalorder %s26, 0
          %s206 = scalar_select %p205, %s26, 0
          %s207 = scalar_lea.vmem %s3, %s206
        $region16: #{projector_fused.2} parent=11 // pred_fallthru
          _
        // Predicated region
        $region17: #{projector_fused.2} parent=11 // pred_check
          %p208 = pneg %p161
        $region18: #{projector_fused.2} parent=11 // pred_check_branch
          %210 = sbr.rel (%p208) target = $region20
        $region19: #{projector_fused.2} parent=11 // pred_region
          %p211 = scmp.lt.s32.totalorder %s26, 0
          %s212 = scalar_select %p211, %s26, 0
          %s213 = scalar_lea.vmem %s4, %s212
        $region20: #{projector_fused.2} parent=11 // pred_fallthru
          _
      $region12: #{projector_fused.2} parent=5 // pred_fallthru
        _
      %p214 = scmp.lt.s32.totalorder %s17, 4
      // Predicated region
      $region21: #{projector_fused.2} parent=5 // pred_check
        %p215 = pneg %p214
      $region22: #{projector_fused.2} parent=5 // pred_check_branch
        %217 = sbr.rel (%p215) target = $region24
      $region23: #{projector_fused.2} parent=5 // pred_region
        // Predicated region
        $region25: #{projector_fused.2} parent=23 // pred_check
          %p218 = pneg %p49
        $region26: #{projector_fused.2} parent=23 // pred_check_branch
          %220 = sbr.rel (%p218) target = $region28
        $region27: #{projector_fused.2} parent=23 // pred_region
          %s221 = sand.u32 %s39, 1
          %s222 = scalar_lea.sflag [#allocation3], %s221
          %s223 = sand.u32 %s39, 1
          %s224 = smul.addr %s223, 32
          %s225 = scalar_lea.vmem [#allocation2], %s224
          %s226 = smul.u32 4, %s25
          %s228 = ssub.s32 512, 512
          %229 = vsyncadd %s222, %s228
          %s230 = smul.addr %s226, 128
          %s231 = scalar_lea.hbm %s0, %s230
          %s233 = sshll.u32 %s225, 4
          %s234 = int_to_ptr.vmem [resolvable:$true] %s233
          %236 = dma.hbm_to_vmem [thread:$0]  %s231, 512, %s234, %s222
        $region28: #{projector_fused.2} parent=23 // pred_fallthru
          _
        // Predicated region
        $region29: #{projector_fused.2} parent=23 // pred_check
          %p237 = pneg %p75
        $region30: #{projector_fused.2} parent=23 // pred_check_branch
          %239 = sbr.rel (%p237) target = $region32
        $region31: #{projector_fused.2} parent=23 // pred_region
          %s240 = sand.u32 %s17, 1
          %s241 = scalar_lea.sflag [#allocation5], %s240
          %s242 = sand.u32 %s65, 1
          %s243 = smul.addr %s242, 32
          %s244 = scalar_lea.vmem [#allocation4], %s243
          %s245 = smul.u32 4, %s25
          %s247 = ssub.s32 512, 512
          %248 = vsyncadd %s241, %s247
          %s249 = smul.addr %s245, 128
          %s250 = scalar_lea.hbm %s1, %s249
          %s252 = sshll.u32 %s244, 4
          %s253 = int_to_ptr.vmem [resolvable:$true] %s252
          %255 = dma.hbm_to_vmem [thread:$0]  %s250, 512, %s253, %s241
        $region32: #{projector_fused.2} parent=23 // pred_fallthru
          _
        // Predicated region
        $region33: #{projector_fused.2} parent=23 // pred_check
          %p256 = pneg %p103
        $region34: #{projector_fused.2} parent=23 // pred_check_branch
          %258 = sbr.rel (%p256) target = $region36
        $region35: #{projector_fused.2} parent=23 // pred_region
          %s259 = sand.u32 %s17, 1
          %s260 = scalar_lea.sflag [#allocation5], %s259
          %s261 = sand.u32 %s93, 1
          %s262 = smul.addr %s261, 256
          %s263 = scalar_lea.vmem [#allocation6], %s262
          %s264 = smul.u32 64, %s25
          %s266 = ssub.s32 4096, 4096
          %267 = vsyncadd %s260, %s266
          %s268 = sadd.s32 %s24, %s264
          %s269 = smul.addr %s268, 64
          %s270 = scalar_lea.hbm %s2, %s269
          %s271 = sshll.u32 %s263, 4
          %s272 = int_to_ptr.vmem [resolvable:$true] %s271
          %277 = dma.hbm_to_vmem [thread:$0]  %s270, 4096, %s272, %s260, 64, 64, 4
        $region36: #{projector_fused.2} parent=23 // pred_fallthru
          _
      $region24: #{projector_fused.2} parent=5 // pred_fallthru
        _
      %p278 = scmp.le.s32.totalorder 1, %s17
      %p279 = scmp.lt.s32.totalorder %s17, 5
      %p280 = pnand %p278, %p279
      %p281 = pneg %p280
      // Predicated region
      $region37: #{projector_fused.2} parent=5 // pred_check
        _
      $region38: #{projector_fused.2} parent=5 // pred_check_branch
        %283 = sbr.rel (%p280) target = $region40
      $region39: #{projector_fused.2} parent=5 // pred_region
        %s284 = ssub.s32 %s17, 1
        %s285 = sand.u32 %s42, 1
        %s286 = scalar_lea.sflag [#allocation3], %s285
        %s287 = sand.u32 %s42, 1
        %s288 = smul.addr %s287, 32
        %s289 = scalar_lea.vmem [#allocation2], %s288
        // Predicated region
        $region41: #{projector_fused.2} parent=39 // pred_check
          %p290 = pneg %p55
        $region42: #{projector_fused.2} parent=39 // pred_check_branch
          %292 = sbr.rel (%p290) target = $region44
        $region43: #{projector_fused.2} parent=39 // pred_region
          %293 = dma.done %s286, 512
        $region44: #{projector_fused.2} parent=39 // pred_fallthru
          _
        %s294 = sand.u32 %s22, 1
        %s295 = scalar_lea.sflag [#allocation5], %s294
        %s296 = sand.u32 %s68, 1
        %s297 = smul.addr %s296, 32
        %s298 = scalar_lea.vmem [#allocation4], %s297
        // Predicated region
        $region45: #{projector_fused.2} parent=39 // pred_check
          %p299 = pneg %p81
        $region46: #{projector_fused.2} parent=39 // pred_check_branch
          %301 = sbr.rel (%p299) target = $region48
        $region47: #{projector_fused.2} parent=39 // pred_region
          %302 = dma.done %s295, 512
        $region48: #{projector_fused.2} parent=39 // pred_fallthru
          _
        %s303 = sand.u32 %s22, 1
        %s304 = scalar_lea.sflag [#allocation5], %s303
        %s305 = sand.u32 %s96, 1
        %s306 = smul.addr %s305, 256
        %s307 = scalar_lea.vmem [#allocation6], %s306
        // Predicated region
        $region49: #{projector_fused.2} parent=39 // pred_check
          %p308 = pneg %p109
        $region50: #{projector_fused.2} parent=39 // pred_check_branch
          %310 = sbr.rel (%p308) target = $region52
        $region51: #{projector_fused.2} parent=39 // pred_region
          %311 = dma.done %s304, 4096
        $region52: #{projector_fused.2} parent=39 // pred_fallthru
          _
        %s312 = sand.u32 %s42, 1
        %s313 = scalar_lea.sflag [#allocation3], %s312
        %s314 = sand.u32 %s42, 1
        %s315 = smul.addr %s314, 32
        %s316 = scalar_lea.vmem [#allocation2], %s315
        %p317 = pneg %p55
        %p318 = pneg %p52
        %s319 = sand.u32 %s22, 1
        %s320 = scalar_lea.sflag [#allocation5], %s319
        %s321 = sand.u32 %s68, 1
        %s322 = smul.addr %s321, 32
        %s323 = scalar_lea.vmem [#allocation4], %s322
        %p324 = pneg %p81
        %p325 = pneg %p78
        %s326 = sand.u32 %s22, 1
        %s327 = scalar_lea.sflag [#allocation5], %s326
        %s328 = sand.u32 %s96, 1
        %s329 = smul.addr %s328, 256
        %s330 = scalar_lea.vmem [#allocation6], %s329
        %p331 = pneg %p109
        %p332 = pneg %p106
        %p333 = scmp.lt.s32.totalorder %s26, 0
        %s334 = scalar_select %p333, %s26, 0
        %s335 = scalar_lea.vmem %s3, %s334
        %p336 = pneg %p135
        %p337 = pneg %p132
        %p338 = scmp.lt.s32.totalorder %s26, 0
        %s339 = scalar_select %p338, %s26, 0
        %s340 = scalar_lea.vmem %s4, %s339
        %p341 = pneg %p161
        %p342 = pneg %p158
        %p343 = pneg %p187
        %p344 = pneg %p184
        %p345 = scmp.lt.s32.totalorder %s26, 0
        %s346 = scalar_select %p345, %s26, 0
        %s347 = smul.addr %s346, 8
        %s348 = scalar_lea.vmem %s5, %s347
        %s349 = smul.u32 4, %s27
        %s350 = smul.u32 4, %s27
        %s351 = smul.u32 64, %s27
        %p352 = scmp.lt.s32.totalorder %s26, 0
        %s353 = scalar_select %p352, %s26, 0
        %s354 = scalar_lea.vmem %s3, %s353
        %p355 = scmp.lt.s32.totalorder %s26, 0
        %s356 = scalar_select %p355, %s26, 0
        %s357 = scalar_lea.vmem %s4, %s356
        %p358 = scmp.lt.s32.totalorder %s26, 0
        %s359 = scalar_select %p358, %s26, 0
        %s360 = smul.addr %s359, 8
        %s361 = scalar_lea.vmem %s5, %s360
        %p363 = scmp.eq.s32.totalorder %s27, 0
        // Predicated region
        $region53: #{projector_fused.2} parent=39 // pred_check
          %p364 = pneg %p363
        $region54: #{projector_fused.2} parent=39 // pred_check_branch
          %366 = sbr.rel (%p364) target = $region56
        $region55: #{projector_fused.2} parent=39 // pred_region
          %367 = vst [vmem:[%s361] sm:$0xff] 0.0
          %368 = vst [vmem:[%s361 + $0x8] sm:$0xff] 0.0
        $region56: #{projector_fused.2} parent=39 // pred_fallthru
          _
        %v369 = vld [vmem:[%s307] sm:$0xf]
        %v370 = vld [vmem:[%s307 + $0x4] sm:$0xf]
        %v371 = vld [vmem:[%s307 + $0x8] sm:$0xf]
        %v372 = vld [vmem:[%s307 + $0xc] sm:$0xf]
        %v373 = vld [vmem:[%s307 + $0x10] sm:$0xf]
        %v374 = vld [vmem:[%s307 + $0x14] sm:$0xf]
        %v375 = vld [vmem:[%s307 + $0x18] sm:$0xf]
        %v376 = vld [vmem:[%s307 + $0x1c] sm:$0xf]
        %v377 = vld [vmem:[%s307 + $0x20] sm:$0xf]
        %v378 = vld [vmem:[%s307 + $0x24] sm:$0xf]
        %v379 = vld [vmem:[%s307 + $0x28] sm:$0xf]
        %v380 = vld [vmem:[%s307 + $0x2c] sm:$0xf]
        %v381 = vld [vmem:[%s307 + $0x30] sm:$0xf]
        %v382 = vld [vmem:[%s307 + $0x34] sm:$0xf]
        %v383 = vld [vmem:[%s307 + $0x38] sm:$0xf]
        %v384 = vld [vmem:[%s307 + $0x3c] sm:$0xf]
        %v385 = vld [vmem:[%s307 + $0x40] sm:$0xf]
        %v386 = vld [vmem:[%s307 + $0x44] sm:$0xf]
        %v387 = vld [vmem:[%s307 + $0x48] sm:$0xf]
        %v388 = vld [vmem:[%s307 + $0x4c] sm:$0xf]
        %v389 = vld [vmem:[%s307 + $0x50] sm:$0xf]
        %v390 = vld [vmem:[%s307 + $0x54] sm:$0xf]
        %v391 = vld [vmem:[%s307 + $0x58] sm:$0xf]
        %v392 = vld [vmem:[%s307 + $0x5c] sm:$0xf]
        %v393 = vld [vmem:[%s307 + $0x60] sm:$0xf]
        %v394 = vld [vmem:[%s307 + $0x64] sm:$0xf]
        %v395 = vld [vmem:[%s307 + $0x68] sm:$0xf]
        %v396 = vld [vmem:[%s307 + $0x6c] sm:$0xf]
        %v397 = vld [vmem:[%s307 + $0x70] sm:$0xf]
        %v398 = vld [vmem:[%s307 + $0x74] sm:$0xf]
        %v399 = vld [vmem:[%s307 + $0x78] sm:$0xf]
        %v400 = vld [vmem:[%s307 + $0x7c] sm:$0xf]
        %v401 = vld [vmem:[%s307 + $0x80] sm:$0xf]
        %v402 = vld [vmem:[%s307 + $0x84] sm:$0xf]
        %v403 = vld [vmem:[%s307 + $0x88] sm:$0xf]
        %v404 = vld [vmem:[%s307 + $0x8c] sm:$0xf]
        %v405 = vld [vmem:[%s307 + $0x90] sm:$0xf]
        %v406 = vld [vmem:[%s307 + $0x94] sm:$0xf]
        %v407 = vld [vmem:[%s307 + $0x98] sm:$0xf]
        %v408 = vld [vmem:[%s307 + $0x9c] sm:$0xf]
        %v409 = vld [vmem:[%s307 + $0xa0] sm:$0xf]
        %v410 = vld [vmem:[%s307 + $0xa4] sm:$0xf]
        %v411 = vld [vmem:[%s307 + $0xa8] sm:$0xf]
        %v412 = vld [vmem:[%s307 + $0xac] sm:$0xf]
        %v413 = vld [vmem:[%s307 + $0xb0] sm:$0xf]
        %v414 = vld [vmem:[%s307 + $0xb4] sm:$0xf]
        %v415 = vld [vmem:[%s307 + $0xb8] sm:$0xf]
        %v416 = vld [vmem:[%s307 + $0xbc] sm:$0xf]
        %v417 = vld [vmem:[%s307 + $0xc0] sm:$0xf]
        %v418 = vld [vmem:[%s307 + $0xc4] sm:$0xf]
        %v419 = vld [vmem:[%s307 + $0xc8] sm:$0xf]
        %v420 = vld [vmem:[%s307 + $0xcc] sm:$0xf]
        %v421 = vld [vmem:[%s307 + $0xd0] sm:$0xf]
        %v422 = vld [vmem:[%s307 + $0xd4] sm:$0xf]
        %v423 = vld [vmem:[%s307 + $0xd8] sm:$0xf]
        %v424 = vld [vmem:[%s307 + $0xdc] sm:$0xf]
        %v425 = vld [vmem:[%s307 + $0xe0] sm:$0xf]
        %v426 = vld [vmem:[%s307 + $0xe4] sm:$0xf]
        %v427 = vld [vmem:[%s307 + $0xe8] sm:$0xf]
        %v428 = vld [vmem:[%s307 + $0xec] sm:$0xf]
        %v429 = vld [vmem:[%s307 + $0xf0] sm:$0xf]
        %v430 = vld [vmem:[%s307 + $0xf4] sm:$0xf]
        %v431 = vld [vmem:[%s307 + $0xf8] sm:$0xf]
        %v432 = vld [vmem:[%s307 + $0xfc] sm:$0xf]
        %v433 = vld [vmem:[%s361] sm:$0xff]
        %v434 = vld [vmem:[%s289] sm:$0xff]
        %v435 = vld [vmem:[%s289 + $0x8] sm:$0xff]
        %v436 = vld [vmem:[%s289 + $0x10] sm:$0xff]
        %v437 = vld [vmem:[%s289 + $0x18] sm:$0xff]
        %v438 = vpack.c.bf16 %v434, %v434
        %v439 = vpack.c.bf16 %v435, %v435
        %v440 = vpack.c.bf16 %v436, %v436
        %v441 = vpack.c.bf16 %v437, %v437
        %v506 = vunpack.c.l.b16 %v369
        %v507 = vunpack.c.l.b16 %v370
        %v508 = vunpack.c.l.b16 %v371
        %v509 = vunpack.c.l.b16 %v372
        %v510 = vunpack.c.l.b16 %v373
        %v511 = vunpack.c.l.b16 %v374
        %v512 = vunpack.c.l.b16 %v375
        %v513 = vunpack.c.l.b16 %v376
        %v514 = vunpack.c.l.b16 %v377
        %v515 = vunpack.c.l.b16 %v378
        %v516 = vunpack.c.l.b16 %v379
        %v517 = vunpack.c.l.b16 %v380
        %v518 = vunpack.c.l.b16 %v381
        %v519 = vunpack.c.l.b16 %v382
        %v520 = vunpack.c.l.b16 %v383
        %v521 = vunpack.c.l.b16 %v384
        %v522 = vunpack.c.l.b16 %v385
        %v523 = vunpack.c.l.b16 %v386
        %v524 = vunpack.c.l.b16 %v387
        %v525 = vunpack.c.l.b16 %v388
        %v526 = vunpack.c.l.b16 %v389
        %v527 = vunpack.c.l.b16 %v390
        %v528 = vunpack.c.l.b16 %v391
        %v529 = vunpack.c.l.b16 %v392
        %v530 = vunpack.c.l.b16 %v393
        %v531 = vunpack.c.l.b16 %v394
        %v532 = vunpack.c.l.b16 %v395
        %v533 = vunpack.c.l.b16 %v396
        %v534 = vunpack.c.l.b16 %v397
        %v535 = vunpack.c.l.b16 %v398
        %v536 = vunpack.c.l.b16 %v399
        %v537 = vunpack.c.l.b16 %v400
        %v538 = vunpack.c.l.b16 %v401
        %v539 = vunpack.c.l.b16 %v402
        %v540 = vunpack.c.l.b16 %v403
        %v541 = vunpack.c.l.b16 %v404
        %v542 = vunpack.c.l.b16 %v405
        %v543 = vunpack.c.l.b16 %v406
        %v544 = vunpack.c.l.b16 %v407
        %v545 = vunpack.c.l.b16 %v408
        %v546 = vunpack.c.l.b16 %v409
        %v547 = vunpack.c.l.b16 %v410
        %v548 = vunpack.c.l.b16 %v411
        %v549 = vunpack.c.l.b16 %v412
        %v550 = vunpack.c.l.b16 %v413
        %v551 = vunpack.c.l.b16 %v414
        %v552 = vunpack.c.l.b16 %v415
        %v553 = vunpack.c.l.b16 %v416
        %v554 = vunpack.c.l.b16 %v417
        %v555 = vunpack.c.l.b16 %v418
        %v556 = vunpack.c.l.b16 %v419
        %v557 = vunpack.c.l.b16 %v420
        %v558 = vunpack.c.l.b16 %v421
        %v559 = vunpack.c.l.b16 %v422
        %v560 = vunpack.c.l.b16 %v423
        %v561 = vunpack.c.l.b16 %v424
        %v562 = vunpack.c.l.b16 %v425
        %v563 = vunpack.c.l.b16 %v426
        %v564 = vunpack.c.l.b16 %v427
        %v565 = vunpack.c.l.b16 %v428
        %v566 = vunpack.c.l.b16 %v429
        %v567 = vunpack.c.l.b16 %v430
        %v568 = vunpack.c.l.b16 %v431
        %v569 = vunpack.c.l.b16 %v432
        %v570 = vpack.c.b16 %v507, %v506
        %v571 = vpack.c.b16 %v509, %v508
        %v572 = vpack.c.b16 %v511, %v510
        %v573 = vpack.c.b16 %v513, %v512
        %v574 = vpack.c.b16 %v515, %v514
        %v575 = vpack.c.b16 %v517, %v516
        %v576 = vpack.c.b16 %v519, %v518
        %v577 = vpack.c.b16 %v521, %v520
        %v578 = vpack.c.b16 %v523, %v522
        %v579 = vpack.c.b16 %v525, %v524
        %v580 = vpack.c.b16 %v527, %v526
        %v581 = vpack.c.b16 %v529, %v528
        %v582 = vpack.c.b16 %v531, %v530
        %v583 = vpack.c.b16 %v533, %v532
        %v584 = vpack.c.b16 %v535, %v534
        %v585 = vpack.c.b16 %v537, %v536
        %v586 = vpack.c.b16 %v539, %v538
        %v587 = vpack.c.b16 %v541, %v540
        %v588 = vpack.c.b16 %v543, %v542
        %v589 = vpack.c.b16 %v545, %v544
        %v590 = vpack.c.b16 %v547, %v546
        %v591 = vpack.c.b16 %v549, %v548
        %v592 = vpack.c.b16 %v551, %v550
        %v593 = vpack.c.b16 %v553, %v552
        %v594 = vpack.c.b16 %v555, %v554
        %v595 = vpack.c.b16 %v557, %v556
        %v596 = vpack.c.b16 %v559, %v558
        %v597 = vpack.c.b16 %v561, %v560
        %v598 = vpack.c.b16 %v563, %v562
        %v599 = vpack.c.b16 %v565, %v564
        %v600 = vpack.c.b16 %v567, %v566
        %v601 = vpack.c.b16 %v569, %v568
        %634 = vmatprep.subr.bf16.mxu0 0
        %635 = vmatpush1.bf16.msra.mxu0 %v570
        %636 = vmatprep.subr.bf16.mxu0 0
        %637 = vmatpush1.bf16.msra.mxu0 %v571
        %638 = vmatprep.subr.bf16.mxu0 0
        %639 = vmatpush1.bf16.msra.mxu0 %v572
        %640 = vmatprep.subr.bf16.mxu0 0
        %641 = vmatpush1.bf16.msra.mxu0 %v573
        %642 = vmatprep.subr.bf16.mxu0 0
        %643 = vmatpush1.bf16.msra.mxu0 %v574
        %644 = vmatprep.subr.bf16.mxu0 0
        %645 = vmatpush1.bf16.msra.mxu0 %v575
        %646 = vmatprep.subr.bf16.mxu0 0
        %647 = vmatpush1.bf16.msra.mxu0 %v576
        %648 = vmatprep.subr.bf16.mxu0 0
        %649 = vmatpush1.bf16.msra.mxu0 %v577
        %650 = vmatprep.subr.bf16.mxu0 0
        %651 = vmatpush1.bf16.msra.mxu0 %v578
        %652 = vmatprep.subr.bf16.mxu0 0
        %653 = vmatpush1.bf16.msra.mxu0 %v579
        %654 = vmatprep.subr.bf16.mxu0 0
        %655 = vmatpush1.bf16.msra.mxu0 %v580
        %656 = vmatprep.subr.bf16.mxu0 0
        %657 = vmatpush1.bf16.msra.mxu0 %v581
        %658 = vmatprep.subr.bf16.mxu0 0
        %659 = vmatpush1.bf16.msra.mxu0 %v582
        %660 = vmatprep.subr.bf16.mxu0 0
        %661 = vmatpush1.bf16.msra.mxu0 %v583
        %662 = vmatprep.subr.bf16.mxu0 0
        %663 = vmatpush1.bf16.msra.mxu0 %v584
        %664 = vmatprep.subr.bf16.mxu0 0
        %665 = vmatpush1.bf16.msra.mxu0 %v585
        %666 = vmatprep.mubr.bf16.mxu0 %v439
        %667 = vmatmul.mubr.bf16.gmra.mrb[0].mxu0 %v438
        %v668 = vpop.f32.mrb[0].mxu0
        %v669 = vadd.f32 0.0, %v668
        %v670 = vpop.f32.mrb[0].mxu0
        %v671 = vpop.f32.mrb[0].mxu0
        %v672 = vpop.f32.mrb[0].mxu0
        %673 = vdwg.mxu0
        %674 = vmatprep.subr.bf16.mxu0 0
        %675 = vmatpush1.bf16.msra.mxu0 %v586
        %676 = vmatprep.subr.bf16.mxu0 0
        %677 = vmatpush1.bf16.msra.mxu0 %v587
        %678 = vmatprep.subr.bf16.mxu0 0
        %679 = vmatpush1.bf16.msra.mxu0 %v588
        %680 = vmatprep.subr.bf16.mxu0 0
        %681 = vmatpush1.bf16.msra.mxu0 %v589
        %682 = vmatprep.subr.bf16.mxu0 0
        %683 = vmatpush1.bf16.msra.mxu0 %v590
        %684 = vmatprep.subr.bf16.mxu0 0
        %685 = vmatpush1.bf16.msra.mxu0 %v591
        %686 = vmatprep.subr.bf16.mxu0 0
        %687 = vmatpush1.bf16.msra.mxu0 %v592
        %688 = vmatprep.subr.bf16.mxu0 0
        %689 = vmatpush1.bf16.msra.mxu0 %v593
        %690 = vmatprep.subr.bf16.mxu0 0
        %691 = vmatpush1.bf16.msra.mxu0 %v594
        %692 = vmatprep.subr.bf16.mxu0 0
        %693 = vmatpush1.bf16.msra.mxu0 %v595
        %694 = vmatprep.subr.bf16.mxu0 0
        %695 = vmatpush1.bf16.msra.mxu0 %v596
        %696 = vmatprep.subr.bf16.mxu0 0
        %697 = vmatpush1.bf16.msra.mxu0 %v597
        %698 = vmatprep.subr.bf16.mxu0 0
        %699 = vmatpush1.bf16.msra.mxu0 %v598
        %700 = vmatprep.subr.bf16.mxu0 0
        %701 = vmatpush1.bf16.msra.mxu0 %v599
        %702 = vmatprep.subr.bf16.mxu0 0
        %703 = vmatpush1.bf16.msra.mxu0 %v600
        %704 = vmatprep.subr.bf16.mxu0 0
        %705 = vmatpush1.bf16.msra.mxu0 %v601
        %706 = vmatprep.mubr.bf16.mxu0 %v441
        %707 = vmatmul.mubr.bf16.gmra.mrb[0].mxu0 %v440
        %v708 = vpop.f32.mrb[0].mxu0
        %v709 = vadd.f32 %v669, %v708
        %v710 = vpop.f32.mrb[0].mxu0
        %v711 = vpop.f32.mrb[0].mxu0
        %v712 = vpop.f32.mrb[0].mxu0
        %713 = vdwg.mxu0
        %v714 = vadd.f32 %v433, %v709
        %715 = vst [vmem:[%s361] sm:$0xff] %v714
        %v716 = vld [vmem:[%s361 + $0x8] sm:$0xff]
        %v717 = vld [vmem:[%s298] sm:$0xff]
        %v718 = vld [vmem:[%s298 + $0x8] sm:$0xff]
        %v719 = vld [vmem:[%s298 + $0x10] sm:$0xff]
        %v720 = vld [vmem:[%s298 + $0x18] sm:$0xff]
        %v721 = vpack.c.bf16 %v717, %v717
        %v722 = vpack.c.bf16 %v718, %v718
        %v723 = vpack.c.bf16 %v719, %v719
        %v724 = vpack.c.bf16 %v720, %v720
        %725 = vmatprep.subr.bf16.mxu0 0
        %726 = vmatpush1.bf16.msra.mxu0 %v570
        %727 = vmatprep.subr.bf16.mxu0 0
        %728 = vmatpush1.bf16.msra.mxu0 %v571
        %729 = vmatprep.subr.bf16.mxu0 0
        %730 = vmatpush1.bf16.msra.mxu0 %v572
        %731 = vmatprep.subr.bf16.mxu0 0
        %732 = vmatpush1.bf16.msra.mxu0 %v573
        %733 = vmatprep.subr.bf16.mxu0 0
        %734 = vmatpush1.bf16.msra.mxu0 %v574
        %735 = vmatprep.subr.bf16.mxu0 0
        %736 = vmatpush1.bf16.msra.mxu0 %v575
        %737 = vmatprep.subr.bf16.mxu0 0
        %738 = vmatpush1.bf16.msra.mxu0 %v576
        %739 = vmatprep.subr.bf16.mxu0 0
        %740 = vmatpush1.bf16.msra.mxu0 %v577
        %741 = vmatprep.subr.bf16.mxu0 0
        %742 = vmatpush1.bf16.msra.mxu0 %v578
        %743 = vmatprep.subr.bf16.mxu0 0
        %744 = vmatpush1.bf16.msra.mxu0 %v579
        %745 = vmatprep.subr.bf16.mxu0 0
        %746 = vmatpush1.bf16.msra.mxu0 %v580
        %747 = vmatprep.subr.bf16.mxu0 0
        %748 = vmatpush1.bf16.msra.mxu0 %v581
        %749 = vmatprep.subr.bf16.mxu0 0
        %750 = vmatpush1.bf16.msra.mxu0 %v582
        %751 = vmatprep.subr.bf16.mxu0 0
        %752 = vmatpush1.bf16.msra.mxu0 %v583
        %753 = vmatprep.subr.bf16.mxu0 0
        %754 = vmatpush1.bf16.msra.mxu0 %v584
        %755 = vmatprep.subr.bf16.mxu0 0
        %756 = vmatpush1.bf16.msra.mxu0 %v585
        %757 = vmatprep.mubr.bf16.mxu0 %v722
        %758 = vmatmul.mubr.bf16.gmra.mrb[0].mxu0 %v721
        %v759 = vpop.f32.mrb[0].mxu0
        %v760 = vadd.f32 0.0, %v759
        %v761 = vpop.f32.mrb[0].mxu0
        %v762 = vpop.f32.mrb[0].mxu0
        %v763 = vpop.f32.mrb[0].mxu0
        %764 = vdwg.mxu0
        %765 = vmatprep.subr.bf16.mxu0 0
        %766 = vmatpush1.bf16.msra.mxu0 %v586
        %767 = vmatprep.subr.bf16.mxu0 0
        %768 = vmatpush1.bf16.msra.mxu0 %v587
        %769 = vmatprep.subr.bf16.mxu0 0
        %770 = vmatpush1.bf16.msra.mxu0 %v588
        %771 = vmatprep.subr.bf16.mxu0 0
        %772 = vmatpush1.bf16.msra.mxu0 %v589
        %773 = vmatprep.subr.bf16.mxu0 0
        %774 = vmatpush1.bf16.msra.mxu0 %v590
        %775 = vmatprep.subr.bf16.mxu0 0
        %776 = vmatpush1.bf16.msra.mxu0 %v591
        %777 = vmatprep.subr.bf16.mxu0 0
        %778 = vmatpush1.bf16.msra.mxu0 %v592
        %779 = vmatprep.subr.bf16.mxu0 0
        %780 = vmatpush1.bf16.msra.mxu0 %v593
        %781 = vmatprep.subr.bf16.mxu0 0
        %782 = vmatpush1.bf16.msra.mxu0 %v594
        %783 = vmatprep.subr.bf16.mxu0 0
        %784 = vmatpush1.bf16.msra.mxu0 %v595
        %785 = vmatprep.subr.bf16.mxu0 0
        %786 = vmatpush1.bf16.msra.mxu0 %v596
        %787 = vmatprep.subr.bf16.mxu0 0
        %788 = vmatpush1.bf16.msra.mxu0 %v597
        %789 = vmatprep.subr.bf16.mxu0 0
        %790 = vmatpush1.bf16.msra.mxu0 %v598
        %791 = vmatprep.subr.bf16.mxu0 0
        %792 = vmatpush1.bf16.msra.mxu0 %v599
        %793 = vmatprep.subr.bf16.mxu0 0
        %794 = vmatpush1.bf16.msra.mxu0 %v600
        %795 = vmatprep.subr.bf16.mxu0 0
        %796 = vmatpush1.bf16.msra.mxu0 %v601
        %797 = vmatprep.mubr.bf16.mxu0 %v724
        %798 = vmatmul.mubr.bf16.gmra.mrb[0].mxu0 %v723
        %v799 = vpop.f32.mrb[0].mxu0
        %v800 = vadd.f32 %v760, %v799
        %v801 = vpop.f32.mrb[0].mxu0
        %v802 = vpop.f32.mrb[0].mxu0
        %v803 = vpop.f32.mrb[0].mxu0
        %804 = vdwg.mxu0
        %v805 = vadd.f32 %v716, %v800
        %806 = vst [vmem:[%s361 + $0x8] sm:$0xff] %v805
        %p807 = scmp.eq.s32.totalorder %s27, 3
        // Predicated region
        $region57: #{projector_fused.2} parent=39 // pred_check
          %p808 = pneg %p807
        $region58: #{projector_fused.2} parent=39 // pred_check_branch
          %810 = sbr.rel (%p808) target = $region60
        $region59: #{projector_fused.2} parent=39 // pred_region
          %v811 = vld [vmem:[%s361] sm:$0xff]
          %v812 = vld [vmem:[%s361 + $0x8] sm:$0xff]
          %v813 = vld [vmem:[%s354] sm:$0x1]
          %v814 = vld [vmem:[%s357] sm:$0x1]
          %v815 = vrot.slane %v811, 4
          %v816 = vadd.f32 %v811, %v815
          %v817 = vrot.slane %v816, 2
          %v818 = vadd.f32 %v816, %v817
          %v819 = vrot.slane %v818, 1
          %v820 = vadd.f32 %v818, %v819
          %v821 = vrot.slane %v812, 4
          %v822 = vadd.f32 %v812, %v821
          %v823 = vrot.slane %v822, 2
          %v824 = vadd.f32 %v822, %v823
          %v825 = vrot.slane %v824, 1
          %v826 = vadd.f32 %v824, %v825
          %v827 = vrcp.pop 8.0
          %v828 = vmul.f32 %v820, %v827
          %v829 = vmul.f32 %v826, %v827
          %v830 = vsub.f32 %v811, %v828
          %v831 = vsub.f32 %v812, %v829
          %v832 = vmul.f32 %v830, %v830
          %v833 = vmul.f32 %v831, %v831
          %v834 = vrot.slane %v832, 4
          %v835 = vadd.f32 %v832, %v834
          %v836 = vrot.slane %v835, 2
          %v837 = vadd.f32 %v835, %v836
          %v838 = vrot.slane %v837, 1
          %v839 = vadd.f32 %v837, %v838
          %v840 = vrot.slane %v833, 4
          %v841 = vadd.f32 %v833, %v840
          %v842 = vrot.slane %v841, 2
          %v843 = vadd.f32 %v841, %v842
          %v844 = vrot.slane %v843, 1
          %v845 = vadd.f32 %v843, %v844
          %v846 = vmul.f32 %v828, 0.0
          %v847 = vmul.f32 %v829, 0.0
          %v848 = vmul.f32 %v846, %v828
          %v849 = vmul.f32 %v847, %v829
          %v850 = vsub.f32 %v839, %v848
          %v851 = vsub.f32 %v845, %v849
          %v852 = vmul.f32 %v850, %v827
          %v853 = vmul.f32 %v851, %v827
          %v854 = vadd.f32 %v852, 1e-05
          %v855 = vadd.f32 %v853, 1e-05
          %v856 = vrsqrt.pop %v854
          %v857 = vrsqrt.pop %v855
          %v858 = vmul.f32 %v830, %v856
          %v859 = vmul.f32 %v831, %v857
          %v861 = vlaneseq
          %v862 = vshrl.u32 %v861, 7
          %v863 = vsub.s32 0, %v862
          %v864 = vrot.slane %v813, %v863
          %v866 = vmul.f32 %v858, %v864
          %v867 = vmul.f32 %v859, %v864
          %v869 = vlaneseq
          %v870 = vshrl.u32 %v869, 7
          %v871 = vsub.s32 0, %v870
          %v872 = vrot.slane %v814, %v871
          %v874 = vadd.f32 %v866, %v872
          %v875 = vadd.f32 %v867, %v872
          %v876 = vmax.f32 %v874, 0.0
          %v877 = vmax.f32 %v875, 0.0
          %878 = vst [vmem:[%s361] sm:$0xff] %v876
          %879 = vst [vmem:[%s361 + $0x8] sm:$0xff] %v877
        $region60: #{projector_fused.2} parent=39 // pred_fallthru
          _
        %p880 = scmp.lt.s32.totalorder %s26, 0
        %s881 = scalar_select %p880, %s26, 0
        %s882 = smul.addr %s881, 8
        %s883 = scalar_lea.vmem %s5, %s882
        // Predicated region
        $region61: #{projector_fused.2} parent=39 // pred_check
          %p884 = pneg %p184
        $region62: #{projector_fused.2} parent=39 // pred_check_branch
          %886 = sbr.rel (%p884) target = $region64
        $region63: #{projector_fused.2} parent=39 // pred_region
          _
        $region64: #{projector_fused.2} parent=39 // pred_fallthru
          _
        // Predicated region
        $region65: #{projector_fused.2} parent=39 // pred_check
          %p887 = pneg %p184
        $region66: #{projector_fused.2} parent=39 // pred_check_branch
          %889 = sbr.rel (%p887) target = $region68
        $region67: #{projector_fused.2} parent=39 // pred_region
          %p890 = scmp.lt.s32.totalorder %s26, 0
          %s891 = scalar_select %p890, %s26, 0
          %s892 = smul.addr %s891, 8
          %s893 = scalar_lea.vmem %s5, %s892
        $region68: #{projector_fused.2} parent=39 // pred_fallthru
          _
      $region40: #{projector_fused.2} parent=5 // pred_fallthru
        _
      %p894 = scmp.le.s32.totalorder 2, %s17
      // Predicated region
      $region69: #{projector_fused.2} parent=5 // pred_check
        %p895 = pneg %p894
      $region70: #{projector_fused.2} parent=5 // pred_check_branch
        %897 = sbr.rel (%p895) target = $region72
      $region71: #{projector_fused.2} parent=5 // pred_region
        %s898 = ssub.s32 %s17, 2
      $region72: #{projector_fused.2} parent=5 // pred_fallthru
        _
    $region6: #{projector_fused.2} parent=1 // loop_footer
      %s21 = sadd.s32 1, %s17
    $region7: #{projector_fused.2} parent=1 // loop_footer_branch
      %16 = sbr.rel target = $region3
    $region8: #{projector_fused.2} parent=1 // loop_exit
      _
    %899 = vsyncpa [#allocation3], 1
    %s900 = scalar_lea.sflag [#allocation3], 1
    %901 = vsyncpa %s900, 1
    %902 = vsyncpa [#allocation5], 1
    %s903 = scalar_lea.sflag [#allocation5], 1
    %904 = vsyncpa %s903, 1

</llo_original>
